<compile_context>
chip_gen: v7x
topology: tpu7x:2x2x1
jax: 0.10.0
libtpu: 0.0.40
codegen_flags: <defaults>
</compile_context>

<pallas_src>
import math
import jax
import jax.numpy as jnp
from jax.experimental import pallas as pl
from jax.experimental.pallas import tpu as pltpu


def _round_up(x, m):
    return ((x + m - 1) // m) * m


def _device_kind():
    try:
        return jax.devices()[0].device_kind.lower()
    except Exception:
        return ""


def _tensorcores_per_chip():
    # v7x has 2 TensorCores per chip; v5e/v6e have 1.
    kind = _device_kind()
    return 2 if ("v7" in kind or "7x" in kind) else 1


def _default_param_dtype():
    # bf16 weights/activations on v6e/v7x (full-rate bf16 MXU); f32 on v5e /
    # unknown (no bf16 VPU/EUP there).  Accumulation is f32 everywhere.
    kind = _device_kind()
    if any(tag in kind for tag in ("v6", "v7", "7x")):
        return jnp.bfloat16
    return jnp.float32


# Bias block rows appended to the weight slab (16 keeps bf16 sublane tiles aligned).
_BIAS_ROWS = 16


# ----------------------------------------------------------------------------
# Parameter packing (do this ONCE per parameter set, not per forward call).
# Single slab layout (rows):
#   [0              : num_inputs    ]  W1  (cols 0:H)
#   [in_p           : in_p+H        ]  W2  (cols 0:H)
#   [in_p+lane      : in_p+lane+H   ]  W3  (cols 0:num_outputs)
#   [in_p+2*lane    : +_BIAS_ROWS   ]  biases (row 0=b1, 1=b2, 2=b3)
# Everything else is zero, so padded lanes/rows contribute exactly 0.
# ----------------------------------------------------------------------------
def pack_actor_params(params, param_dtype=None):
    if param_dtype is None:
        param_dtype = _default_param_dtype()
    W1, b1 = params["W1"], params["b1"]
    W2, b2 = params["W2"], params["b2"]
    W3, b3 = params["W3"], params["b3"]
    num_inputs, hidden = W1.shape
    num_outputs = W3.shape[1]

    in_p = _round_up(num_inputs, 32)                   # aligned contraction dim
    lane = _round_up(max(hidden, num_outputs), 128)    # lane-dense width

    rows = in_p + 2 * lane + _BIAS_ROWS
    wp = jnp.zeros((rows, lane), param_dtype)
    wp = wp.at[:num_inputs, :hidden].set(W1.astype(param_dtype))
    wp = wp.at[in_p:in_p + hidden, :hidden].set(W2.astype(param_dtype))
    wp = wp.at[in_p + lane:in_p + lane + hidden, :num_outputs].set(
        W3.astype(param_dtype))
    b0 = in_p + 2 * lane
    wp = wp.at[b0 + 0, :hidden].set(b1.reshape(-1).astype(param_dtype))
    wp = wp.at[b0 + 1, :hidden].set(b2.reshape(-1).astype(param_dtype))
    wp = wp.at[b0 + 2, :num_outputs].set(b3.reshape(-1).astype(param_dtype))

    return dict(Wp=wp, num_inputs=num_inputs, hidden=hidden,
                num_outputs=num_outputs, in_p=in_p, lane=lane)


# ----------------------------------------------------------------------------
# Fused forward: 3 matmuls + biases + ReLU + tanh in one kernel, tiled over
# batch.  The packed slab (~tens of KiB) stays VMEM-resident for the grid.
# ----------------------------------------------------------------------------
def actor_forward_packed(x, packed, *, tile_b=1024, out_dtype=jnp.bfloat16,
                         return_padded=False):
    B, nin = x.shape
    assert nin == packed["num_inputs"]
    in_p, lane = packed["in_p"], packed["lane"]
    nout = packed["num_outputs"]
    wp = packed["Wp"]
    w_rows = wp.shape[0]
    cdt = wp.dtype                                     # MXU compute dtype
    cd_isize = jnp.dtype(cdt).itemsize
    out_isize = jnp.dtype(out_dtype).itemsize

    # --- chip-aware batch tile ------------------------------------------
    n_tc = _tensorcores_per_chip()
    b8 = _round_up(max(B, 8), 8)
    if n_tc >= 2 and b8 >= 16:
        tile = _round_up(pl.cdiv(b8, n_tc), 8)         # exactly 2 steps on v7x
    else:
        tile = b8                                      # 1 step on v5e/v6e
    tile = min(tile, max(8, _round_up(tile_b, 8)))
    b_pad = _round_up(B, tile)

    # Zero-pad batch + input features in the compute dtype (exact zeros ->
    # results unchanged; no in-kernel cast, half the input DMA when bf16).
    x_pad = jnp.zeros((b_pad, in_p), cdt).at[:B, :nin].set(x.astype(cdt))

    b0 = in_p + 2 * lane

    def kernel(x_ref, wp_ref, o_ref):
        xv = x_ref[...]                                # already in compute dtype
        w1 = wp_ref[0:in_p, :]                         # static, aligned slices
        w2 = wp_ref[in_p:in_p + lane, :]
        w3 = wp_ref[in_p + lane:in_p + 2 * lane, :]
        bb = wp_ref[b0:b0 + _BIAS_ROWS, :].astype(jnp.float32)
        # layer 1 + ReLU  (MXU, f32 accumulation; f32 elementwise on all chips)
        h = jnp.dot(xv, w1, preferred_element_type=jnp.float32)
        h = jnp.maximum(h + bb[0:1, :], 0.0)
        # layer 2 + ReLU
        h = jnp.dot(h.astype(cdt), w2, preferred_element_type=jnp.float32)
        h = jnp.maximum(h + bb[1:2, :], 0.0)
        # layer 3 + tanh (EUP), lane-dense store in out dtype
        h = jnp.dot(h.astype(cdt), w3, preferred_element_type=jnp.float32)
        o_ref[...] = jnp.tanh(h + bb[2:3, :]).astype(o_ref.dtype)

    # Cost estimate reflecting the padded work actually executed.
    cost = pl.CostEstimate(
        flops=int(2 * b_pad * (in_p * lane + 2 * lane * lane)),
        transcendentals=int(b_pad * lane),
        bytes_accessed=int(x_pad.size * cd_isize + wp.size * cd_isize
                           + b_pad * lane * out_isize),
    )

    # Explicit scoped-VMEM limit (double-buffered in+out blocks + slab + slack).
    vmem_need = (2 * (tile * in_p * cd_isize + tile * lane * out_isize)
                 + wp.size * cd_isize + (1 << 20))
    vmem_limit = int(min(max(vmem_need, 16 << 20), 64 << 20))

    out_pad = pl.pallas_call(
        kernel,
        out_shape=jax.ShapeDtypeStruct((b_pad, lane), out_dtype),
        grid=(b_pad // tile,),
        in_specs=[
            pl.BlockSpec((tile, in_p), lambda i: (i, 0)),     # batch-tiled input
            pl.BlockSpec((w_rows, lane), lambda i: (0, 0)),   # resident weight+bias slab
        ],
        out_specs=pl.BlockSpec((tile, lane), lambda i: (i, 0)),  # lane-dense output
        compiler_params=pltpu.CompilerParams(
            dimension_semantics=("parallel",),                # megacore on v7x
            vmem_limit_bytes=vmem_limit),
        cost_estimate=cost,
    )(x_pad, wp)

    if return_padded:
        # Caller must ignore rows >= B (they hold tanh(bias)) and cols >= nout (0).
        return out_pad
    return out_pad[:B, :nout]


def actor_forward(x, params, *, tile_b=1024, param_dtype=None,
                  out_dtype=jnp.bfloat16):
    """Convenience wrapper (packs per call; hoist pack_actor_params in real use)."""
    return actor_forward_packed(x, pack_actor_params(params, param_dtype),
                                tile_b=tile_b, out_dtype=out_dtype)


# ----------------------------------------------------------------------------
# PyTorch-style init + pure-JAX reference
# ----------------------------------------------------------------------------
def init_params(key, num_inputs, hidden_size, num_outputs):
    ks = jax.random.split(key, 6)

    def linear(kw, kb, fan_in, fan_out):
        bound = 1.0 / math.sqrt(fan_in)
        W = jax.random.uniform(kw, (fan_in, fan_out), jnp.float32, -bound, bound)
        b = jax.random.uniform(kb, (1, fan_out), jnp.float32, -bound, bound)
        return W, b

    W1, b1 = linear(ks[0], ks[1], num_inputs, hidden_size)
    W2, b2 = linear(ks[2], ks[3], hidden_size, hidden_size)
    W3, b3 = linear(ks[4], ks[5], hidden_size, num_outputs)
    return dict(W1=W1, b1=b1, W2=W2, b2=b2, W3=W3, b3=b3)


def actor_reference(x, p):
    h = jnp.maximum(x @ p["W1"] + p["b1"], 0.0)
    h = jnp.maximum(h @ p["W2"] + p["b2"], 0.0)
    return jnp.tanh(h @ p["W3"] + p["b3"])


if __name__ == "__main__":
    # HalfCheetah DDPG actor: obs dim = 17, hidden = 32, action dim = 6.
    B, num_inputs, hidden_size, num_outputs = 4, 17, 32, 6

    key = jax.random.PRNGKey(0)
    k_x, k_p, k_x2 = jax.random.split(key, 3)
    x = jax.random.normal(k_x, (B, num_inputs), jnp.float32)
    params = init_params(k_p, num_inputs, hidden_size, num_outputs)
    ref = actor_reference(x, params)

    # f32 slab + f32 output: tight numerical check.  jit fuses pad + call + slice.
    packed_f32 = pack_actor_params(params, jnp.float32)
    fwd_f32 = jax.jit(
        lambda xv: actor_forward_packed(xv, packed_f32, out_dtype=jnp.float32))
    out = jax.block_until_ready(fwd_f32(x))
    assert out.shape == (B, num_outputs)
    assert jnp.allclose(out, ref, atol=1e-5, rtol=1e-4)

    # Default path: bf16 weights/activations on v6e/v7x (f32 on v5e), bf16 output.
    packed_def = pack_actor_params(params)
    fwd_def = jax.jit(lambda xv: actor_forward_packed(xv, packed_def))
    out_def = jax.block_until_ready(fwd_def(x))
    assert out_def.shape == (B, num_outputs)
    assert jnp.allclose(out_def.astype(jnp.float32), ref, atol=5e-2)

    # Larger batch exercising the batch grid (2 parallel steps on v7x, 1 on v5e/v6e).
    B2 = 1000
    x2 = jax.random.normal(k_x2, (B2, num_inputs), jnp.float32)
    fwd_big = jax.jit(
        lambda xv: actor_forward_packed(xv, packed_f32, out_dtype=jnp.float32))
    out2 = jax.block_until_ready(fwd_big(x2))
    ref2 = actor_reference(x2, params)
    assert out2.shape == (B2, num_outputs)
    assert jnp.allclose(out2, ref2, atol=1e-4, rtol=1e-4)

    print("KERNEL_OK")
</pallas_src>

<mosaic_0001>
module attributes {stable_mosaic.version = 11 : i64} {
  func.func @kernel(%arg0: i32, %arg1: memref<8x32xf32, #tpu.memory_space<vmem>>, %arg2: memref<304x128xf32, #tpu.memory_space<vmem>>, %arg3: memref<8x128xf32, #tpu.memory_space<vmem>>) attributes {dimension_semantics = [#tpu.dimension_semantics<parallel>], iteration_bounds = array<i64: 1>, scalar_prefetch = 0 : i64, scratch_operands = 0 : i64, tpu.core_type = #tpu.core_type<tc>, window_params = [{transform_indices = @transform_0, window_bounds = array<i64: 8, 32>}, {pipeline_mode = #tpu.pipeline_mode<synchronous>, transform_indices = @transform_1, window_bounds = array<i64: 304, 128>}, {transform_indices = @transform_2, window_bounds = array<i64: 8, 128>}]} {
    %c0 = arith.constant 0 : index
    %c0_0 = arith.constant 0 : index
    %0 = vector.load %arg1[%c0, %c0_0] : memref<8x32xf32, #tpu.memory_space<vmem>>, vector<8x32xf32>
    %c0_1 = arith.constant 0 : index
    %c0_2 = arith.constant 0 : index
    %1 = vector.load %arg2[%c0_1, %c0_2] : memref<304x128xf32, #tpu.memory_space<vmem>>, vector<32x128xf32>
    %c32 = arith.constant 32 : index
    %c0_3 = arith.constant 0 : index
    %2 = vector.load %arg2[%c32, %c0_3] : memref<304x128xf32, #tpu.memory_space<vmem>>, vector<128x128xf32>
    %c160 = arith.constant 160 : index
    %c0_4 = arith.constant 0 : index
    %3 = vector.load %arg2[%c160, %c0_4] : memref<304x128xf32, #tpu.memory_space<vmem>>, vector<128x128xf32>
    %c288 = arith.constant 288 : index
    %c0_5 = arith.constant 0 : index
    %4 = vector.load %arg2[%c288, %c0_5] : memref<304x128xf32, #tpu.memory_space<vmem>>, vector<16x128xf32>
    %cst = arith.constant dense<0.000000e+00> : vector<8x128xf32>
    %5 = tpu.matmul %0, %1, %cst {dimension_numbers = #tpu.dot_dimension_numbers<[1], [0], [0], [1], [0, 0, 1, 1], [], []>} : vector<8x32xf32>, vector<32x128xf32>, vector<8x128xf32> -> vector<8x128xf32>
    %6 = vector.extract_strided_slice %4 {offsets = [0, 0], sizes = [1, 128], strides = [1, 1]} : vector<16x128xf32> to vector<1x128xf32>
    %7 = vector.broadcast %6 : vector<1x128xf32> to vector<8x128xf32>
    %8 = arith.addf %5, %7 : vector<8x128xf32>
    %cst_6 = arith.constant 0.000000e+00 : f32
    %9 = vector.broadcast %cst_6 : f32 to vector<8x128xf32>
    %10 = arith.maximumf %8, %9 : vector<8x128xf32>
    %cst_7 = arith.constant dense<0.000000e+00> : vector<8x128xf32>
    %11 = tpu.matmul %10, %2, %cst_7 {dimension_numbers = #tpu.dot_dimension_numbers<[1], [0], [0], [1], [0, 0, 1, 1], [], []>} : vector<8x128xf32>, vector<128x128xf32>, vector<8x128xf32> -> vector<8x128xf32>
    %12 = vector.extract_strided_slice %4 {offsets = [1, 0], sizes = [1, 128], strides = [1, 1]} : vector<16x128xf32> to vector<1x128xf32>
    %13 = vector.broadcast %12 : vector<1x128xf32> to vector<8x128xf32>
    %14 = arith.addf %11, %13 : vector<8x128xf32>
    %cst_8 = arith.constant 0.000000e+00 : f32
    %15 = vector.broadcast %cst_8 : f32 to vector<8x128xf32>
    %16 = arith.maximumf %14, %15 : vector<8x128xf32>
    %cst_9 = arith.constant dense<0.000000e+00> : vector<8x128xf32>
    %17 = tpu.matmul %16, %3, %cst_9 {dimension_numbers = #tpu.dot_dimension_numbers<[1], [0], [0], [1], [0, 0, 1, 1], [], []>} : vector<8x128xf32>, vector<128x128xf32>, vector<8x128xf32> -> vector<8x128xf32>
    %18 = vector.extract_strided_slice %4 {offsets = [2, 0], sizes = [1, 128], strides = [1, 1]} : vector<16x128xf32> to vector<1x128xf32>
    %19 = vector.broadcast %18 : vector<1x128xf32> to vector<8x128xf32>
    %20 = arith.addf %17, %19 : vector<8x128xf32>
    %21 = math.tanh %20 : vector<8x128xf32>
    %c0_10 = arith.constant 0 : index
    %c0_11 = arith.constant 0 : index
    %22 = vector.load %arg3[%c0_10, %c0_11] : memref<8x128xf32, #tpu.memory_space<vmem>>, vector<8x128xf32>
    tpu.vector_store %arg3[%c0_10, %c0_11], %21 {strides = array<i32>} : memref<8x128xf32, #tpu.memory_space<vmem>>, vector<8x128xf32>,
    return
  }
  func.func @transform_0(%arg0: i32) -> (i32, i32) {
    %c0_i32 = arith.constant 0 : i32
    %c0_i32_0 = arith.constant 0 : i32
    return %arg0, %c0_i32 : i32, i32
  }
  func.func @transform_1(%arg0: i32) -> (i32, i32) {
    %c0_i32 = arith.constant 0 : i32
    %c0_i32_0 = arith.constant 0 : i32
    %c0_i32_1 = arith.constant 0 : i32
    return %c0_i32, %c0_i32_0 : i32, i32
  }
  func.func @transform_2(%arg0: i32) -> (i32, i32) {
    %c0_i32 = arith.constant 0 : i32
    %c0_i32_0 = arith.constant 0 : i32
    return %arg0, %c0_i32 : i32, i32
  }
}

</mosaic_0001>

<llo_original>
// kernel: _lambda_.1
$region0: #{_lambda_.1}
  #allocation0 [shape = 'u32[]', space=smem, size = 0x4, offset = 0x4, fixed_abs, tag = 'smem constant byte address 0x4 - core index']
  #allocation1 [shape = 'u32[144,128]{1,0:T(1,128)}', space=vmem, size = 0x12000, scoped, tag = 'internal scratch']
  %s0 = inlined_call_operand.vmem [shape: f32[8,32], index: 0, kind: input, shape index: {}]
  %s1 = inlined_call_operand.hbm [shape: f32[304,128], index: 1, kind: input, shape index: {}]
  %s2 = inlined_call_operand.vmem [shape: f32[8,128], index: 2, kind: output, shape index: {}]
  %s3 = sld [smem:[#allocation0]]
  $region22: #{_lambda_.1} parent=0
    _
  %s5 = ssub.s32 1, %s3
  %s6 = scalar_select 0, %s5, %s3
  $region1: #{_lambda_.1} parent=0
    #allocation2 [shape = 'u8[155648]{0}', space=vmem, size = 0x26000, scoped, tag = 'input window, operand 1, single buffered']
    #allocation3 [shape = 's32[1]{0}', space=sflag, size = 0x4, scoped, tag = 'scoped memory for _lambda_.1']
    %7 = vsyncpa [#allocation3], 0
    // Predicated region
    $region2: #{_lambda_.1} parent=1 // pred_check
      _
    $region3: #{_lambda_.1} parent=1 // pred_check_branch
      %9 = sbr.rel (0) target = $region5
    $region4: #{_lambda_.1} parent=1 // pred_region
      _
    $region5: #{_lambda_.1} parent=1 // pred_fallthru
      _
    // Predicated region
    $region6: #{_lambda_.1} parent=1 // pred_check
      _
    $region7: #{_lambda_.1} parent=1 // pred_check_branch
      %11 = sbr.rel (0) target = $region9
    $region8: #{_lambda_.1} parent=1 // pred_region
      %s13 = ssub.s32 4864, 4864
      %14 = vsyncadd [#allocation3], %s13
      %s15 = sshll.u32 [#allocation2], 4
      %s16 = int_to_ptr.vmem [resolvable:$true] %s15
      %21 = dma.hbm_to_vmem [thread:$0]  %s1, 4864, %s16, [#allocation3], 128, 128, 8
    $region9: #{_lambda_.1} parent=1 // pred_fallthru
      _
    // Predicated region
    $region10: #{_lambda_.1} parent=1 // pred_check
      _
    $region11: #{_lambda_.1} parent=1 // pred_check_branch
      %23 = sbr.rel (0) target = $region13
    $region12: #{_lambda_.1} parent=1 // pred_region
      %24 = dma.done [#allocation3], 4864
    $region13: #{_lambda_.1} parent=1 // pred_fallthru
      _
    %v25 = vld [vmem:[%s0] sm:$0xff]
    %v26 = vld [vmem:[#allocation2] sm:$0xff]
    %v27 = vld [vmem:[#allocation2 + $0x8] sm:$0xff]
    %v28 = vld [vmem:[#allocation2 + $0x10] sm:$0xff]
    %v29 = vld [vmem:[#allocation2 + $0x18] sm:$0xff]
    %v30 = vld [vmem:[#allocation2 + $0x20] sm:$0xff]
    %v31 = vld [vmem:[#allocation2 + $0x28] sm:$0xff]
    %v32 = vld [vmem:[#allocation2 + $0x30] sm:$0xff]
    %v33 = vld [vmem:[#allocation2 + $0x38] sm:$0xff]
    %v34 = vld [vmem:[#allocation2 + $0x40] sm:$0xff]
    %v35 = vld [vmem:[#allocation2 + $0x48] sm:$0xff]
    %v36 = vld [vmem:[#allocation2 + $0x50] sm:$0xff]
    %v37 = vld [vmem:[#allocation2 + $0x58] sm:$0xff]
    %v38 = vld [vmem:[#allocation2 + $0x60] sm:$0xff]
    %v39 = vld [vmem:[#allocation2 + $0x68] sm:$0xff]
    %v40 = vld [vmem:[#allocation2 + $0x70] sm:$0xff]
    %v41 = vld [vmem:[#allocation2 + $0x78] sm:$0xff]
    %v42 = vld [vmem:[#allocation2 + $0x80] sm:$0xff]
    %v43 = vld [vmem:[#allocation2 + $0x88] sm:$0xff]
    %v44 = vld [vmem:[#allocation2 + $0x90] sm:$0xff]
    %v45 = vld [vmem:[#allocation2 + $0x98] sm:$0xff]
    %v46 = vld [vmem:[#allocation2 + $0xa0] sm:$0xff]
    %v47 = vld [vmem:[#allocation2 + $0xa8] sm:$0xff]
    %v48 = vld [vmem:[#allocation2 + $0xb0] sm:$0xff]
    %v49 = vld [vmem:[#allocation2 + $0xb8] sm:$0xff]
    %v50 = vld [vmem:[#allocation2 + $0xc0] sm:$0xff]
    %v51 = vld [vmem:[#allocation2 + $0xc8] sm:$0xff]
    %v52 = vld [vmem:[#allocation2 + $0xd0] sm:$0xff]
    %v53 = vld [vmem:[#allocation2 + $0xd8] sm:$0xff]
    %v54 = vld [vmem:[#allocation2 + $0xe0] sm:$0xff]
    %v55 = vld [vmem:[#allocation2 + $0xe8] sm:$0xff]
    %v56 = vld [vmem:[#allocation2 + $0xf0] sm:$0xff]
    %v57 = vld [vmem:[#allocation2 + $0xf8] sm:$0xff]
    %v58 = vld [vmem:[#allocation2 + $0x100] sm:$0xff]
    %v59 = vld [vmem:[#allocation2 + $0x108] sm:$0xff]
    %v60 = vld [vmem:[#allocation2 + $0x110] sm:$0xff]
    %v61 = vld [vmem:[#allocation2 + $0x118] sm:$0xff]
    %v62 = vld [vmem:[#allocation2 + $0x120] sm:$0xff]
    %v63 = vlaneseq
    %v64 = vshrl.u32 %v63, 7
    %v65 = vsub.s32 0, %v64
    %v66 = vrot.slane %v62, %v65
    %vm67 = vcmask 261120
    %v69 = vsel %vm67, %v25, 0
    %71 = vmatprep.subr.mxu0 0.0
    %72 = vmatpush1.msra.mxu0 %v26
    %73 = vmatprep.subr.mxu0 0.0
    %74 = vmatpush1.msra.mxu0 %v27
    %75 = vmatprep.subr.mxu0 0.0
    %76 = vmatpush1.msra.mxu0 %v28
    %77 = vmatprep.subr.mxu0 0.0
    %78 = vmatpush1.msra.mxu0 %v29
    %79 = vmatprep.subr.mxu0 0.0
    %80 = vmatpush1.msra.mxu0 0.0
    %81 = vmatprep.subr.mxu0 0.0
    %82 = vmatpush1.msra.mxu0 0.0
    %83 = vmatprep.subr.mxu0 0.0
    %84 = vmatpush1.msra.mxu0 0.0
    %85 = vmatprep.subr.mxu0 0.0
    %86 = vmatpush1.msra.mxu0 0.0
    %87 = vmatprep.subr.mxu0 0.0
    %88 = vmatpush1.msra.mxu0 0.0
    %89 = vmatprep.subr.mxu0 0.0
    %90 = vmatpush1.msra.mxu0 0.0
    %91 = vmatprep.subr.mxu0 0.0
    %92 = vmatpush1.msra.mxu0 0.0
    %93 = vmatprep.subr.mxu0 0.0
    %94 = vmatpush1.msra.mxu0 0.0
    %95 = vmatprep.subr.mxu0 0.0
    %96 = vmatpush1.msra.mxu0 0.0
    %97 = vmatprep.subr.mxu0 0.0
    %98 = vmatpush1.msra.mxu0 0.0
    %99 = vmatprep.subr.mxu0 0.0
    %100 = vmatpush1.msra.mxu0 0.0
    %101 = vmatprep.subr.mxu0 0.0
    %102 = vmatpush1.msra.mxu0 0.0
    %103 = vmatprep.subr.mxu0 0.0
    %104 = vmatpush1.msra.mxu0 0.0
    %105 = vmatprep.subr.mxu0 0.0
    %106 = vmatpush1.msra.mxu0 0.0
    %107 = vmatprep.subr.mxu0 0.0
    %108 = vmatpush1.msra.mxu0 0.0
    %109 = vmatprep.subr.mxu0 0.0
    %110 = vmatpush1.msra.mxu0 0.0
    %111 = vmatprep.subr.mxu0 0.0
    %112 = vmatpush1.msra.mxu0 0.0
    %113 = vmatprep.subr.mxu0 0.0
    %114 = vmatpush1.msra.mxu0 0.0
    %115 = vmatprep.subr.mxu0 0.0
    %116 = vmatpush1.msra.mxu0 0.0
    %117 = vmatprep.subr.mxu0 0.0
    %118 = vmatpush1.msra.mxu0 0.0
    %119 = vmatprep.subr.mxu0 0.0
    %120 = vmatpush1.msra.mxu0 0.0
    %121 = vmatprep.subr.mxu0 0.0
    %122 = vmatpush1.msra.mxu0 0.0
    %123 = vmatprep.subr.mxu0 0.0
    %124 = vmatpush1.msra.mxu0 0.0
    %125 = vmatprep.subr.mxu0 0.0
    %126 = vmatpush1.msra.mxu0 0.0
    %127 = vmatprep.subr.mxu0 0.0
    %128 = vmatpush1.msra.mxu0 0.0
    %129 = vmatprep.subr.mxu0 0.0
    %130 = vmatpush1.msra.mxu0 0.0
    %131 = vmatprep.subr.mxu0 0.0
    %132 = vmatpush1.msra.mxu0 0.0
    %133 = vmatprep.subr.mxu0 0.0
    %134 = vmatpush1.msra.mxu0 0.0
    %135 = vmatprep.mubr.f32.mxu0 0.0
    %136 = vmatmul.mubr.f32.gmra.mrb[0].mxu0 %v69
    %v137 = vpop.f32.mrb[0].mxu0
    %v138 = vadd.f32 %v66, %v137
    %v139 = vpop.f32.mrb[0].mxu0
    %140 = vdwg.mxu0
    %v141 = vmax.f32 %v138, 0.0
    %v142 = vlaneseq
    %v143 = vshrl.u32 %v142, 7
    %v144 = vsub.s32 1, %v143
    %v145 = vrot.slane %v62, %v144
    %146 = vmatprep.subr.mxu0 0.0
    %147 = vmatpush1.msra.mxu0 %v30
    %148 = vmatprep.subr.mxu0 0.0
    %149 = vmatpush1.msra.mxu0 %v31
    %150 = vmatprep.subr.mxu0 0.0
    %151 = vmatpush1.msra.mxu0 %v32
    %152 = vmatprep.subr.mxu0 0.0
    %153 = vmatpush1.msra.mxu0 %v33
    %154 = vmatprep.subr.mxu0 0.0
    %155 = vmatpush1.msra.mxu0 %v34
    %156 = vmatprep.subr.mxu0 0.0
    %157 = vmatpush1.msra.mxu0 %v35
    %158 = vmatprep.subr.mxu0 0.0
    %159 = vmatpush1.msra.mxu0 %v36
    %160 = vmatprep.subr.mxu0 0.0
    %161 = vmatpush1.msra.mxu0 %v37
    %162 = vmatprep.subr.mxu0 0.0
    %163 = vmatpush1.msra.mxu0 %v38
    %164 = vmatprep.subr.mxu0 0.0
    %165 = vmatpush1.msra.mxu0 %v39
    %166 = vmatprep.subr.mxu0 0.0
    %167 = vmatpush1.msra.mxu0 %v40
    %168 = vmatprep.subr.mxu0 0.0
    %169 = vmatpush1.msra.mxu0 %v41
    %170 = vmatprep.subr.mxu0 0.0
    %171 = vmatpush1.msra.mxu0 %v42
    %172 = vmatprep.subr.mxu0 0.0
    %173 = vmatpush1.msra.mxu0 %v43
    %174 = vmatprep.subr.mxu0 0.0
    %175 = vmatpush1.msra.mxu0 %v44
    %176 = vmatprep.subr.mxu0 0.0
    %177 = vmatpush1.msra.mxu0 %v45
    %178 = vmatprep.subr.mxu0 0.0
    %179 = vmatpush1.msra.mxu0 0.0
    %180 = vmatprep.subr.mxu0 0.0
    %181 = vmatpush1.msra.mxu0 0.0
    %182 = vmatprep.subr.mxu0 0.0
    %183 = vmatpush1.msra.mxu0 0.0
    %184 = vmatprep.subr.mxu0 0.0
    %185 = vmatpush1.msra.mxu0 0.0
    %186 = vmatprep.subr.mxu0 0.0
    %187 = vmatpush1.msra.mxu0 0.0
    %188 = vmatprep.subr.mxu0 0.0
    %189 = vmatpush1.msra.mxu0 0.0
    %190 = vmatprep.subr.mxu0 0.0
    %191 = vmatpush1.msra.mxu0 0.0
    %192 = vmatprep.subr.mxu0 0.0
    %193 = vmatpush1.msra.mxu0 0.0
    %194 = vmatprep.subr.mxu0 0.0
    %195 = vmatpush1.msra.mxu0 0.0
    %196 = vmatprep.subr.mxu0 0.0
    %197 = vmatpush1.msra.mxu0 0.0
    %198 = vmatprep.subr.mxu0 0.0
    %199 = vmatpush1.msra.mxu0 0.0
    %200 = vmatprep.subr.mxu0 0.0
    %201 = vmatpush1.msra.mxu0 0.0
    %202 = vmatprep.subr.mxu0 0.0
    %203 = vmatpush1.msra.mxu0 0.0
    %204 = vmatprep.subr.mxu0 0.0
    %205 = vmatpush1.msra.mxu0 0.0
    %206 = vmatprep.subr.mxu0 0.0
    %207 = vmatpush1.msra.mxu0 0.0
    %208 = vmatprep.subr.mxu0 0.0
    %209 = vmatpush1.msra.mxu0 0.0
    %210 = vmatprep.mubr.f32.mxu0 0.0
    %211 = vmatmul.mubr.f32.gmra.mrb[0].mxu0 %v141
    %v212 = vpop.f32.mrb[0].mxu0
    %v213 = vadd.f32 %v145, %v212
    %v214 = vpop.f32.mrb[0].mxu0
    %215 = vdwg.mxu0
    %v216 = vmax.f32 %v213, 0.0
    %v217 = vlaneseq
    %v218 = vshrl.u32 %v217, 7
    %v219 = vsub.s32 2, %v218
    %v220 = vrot.slane %v62, %v219
    %221 = vmatprep.subr.mxu0 0.0
    %222 = vmatpush1.msra.mxu0 %v46
    %223 = vmatprep.subr.mxu0 0.0
    %224 = vmatpush1.msra.mxu0 %v47
    %225 = vmatprep.subr.mxu0 0.0
    %226 = vmatpush1.msra.mxu0 %v48
    %227 = vmatprep.subr.mxu0 0.0
    %228 = vmatpush1.msra.mxu0 %v49
    %229 = vmatprep.subr.mxu0 0.0
    %230 = vmatpush1.msra.mxu0 %v50
    %231 = vmatprep.subr.mxu0 0.0
    %232 = vmatpush1.msra.mxu0 %v51
    %233 = vmatprep.subr.mxu0 0.0
    %234 = vmatpush1.msra.mxu0 %v52
    %235 = vmatprep.subr.mxu0 0.0
    %236 = vmatpush1.msra.mxu0 %v53
    %237 = vmatprep.subr.mxu0 0.0
    %238 = vmatpush1.msra.mxu0 %v54
    %239 = vmatprep.subr.mxu0 0.0
    %240 = vmatpush1.msra.mxu0 %v55
    %241 = vmatprep.subr.mxu0 0.0
    %242 = vmatpush1.msra.mxu0 %v56
    %243 = vmatprep.subr.mxu0 0.0
    %244 = vmatpush1.msra.mxu0 %v57
    %245 = vmatprep.subr.mxu0 0.0
    %246 = vmatpush1.msra.mxu0 %v58
    %247 = vmatprep.subr.mxu0 0.0
    %248 = vmatpush1.msra.mxu0 %v59
    %249 = vmatprep.subr.mxu0 0.0
    %250 = vmatpush1.msra.mxu0 %v60
    %251 = vmatprep.subr.mxu0 0.0
    %252 = vmatpush1.msra.mxu0 %v61
    %253 = vmatprep.subr.mxu0 0.0
    %254 = vmatpush1.msra.mxu0 0.0
    %255 = vmatprep.subr.mxu0 0.0
    %256 = vmatpush1.msra.mxu0 0.0
    %257 = vmatprep.subr.mxu0 0.0
    %258 = vmatpush1.msra.mxu0 0.0
    %259 = vmatprep.subr.mxu0 0.0
    %260 = vmatpush1.msra.mxu0 0.0
    %261 = vmatprep.subr.mxu0 0.0
    %262 = vmatpush1.msra.mxu0 0.0
    %263 = vmatprep.subr.mxu0 0.0
    %264 = vmatpush1.msra.mxu0 0.0
    %265 = vmatprep.subr.mxu0 0.0
    %266 = vmatpush1.msra.mxu0 0.0
    %267 = vmatprep.subr.mxu0 0.0
    %268 = vmatpush1.msra.mxu0 0.0
    %269 = vmatprep.subr.mxu0 0.0
    %270 = vmatpush1.msra.mxu0 0.0
    %271 = vmatprep.subr.mxu0 0.0
    %272 = vmatpush1.msra.mxu0 0.0
    %273 = vmatprep.subr.mxu0 0.0
    %274 = vmatpush1.msra.mxu0 0.0
    %275 = vmatprep.subr.mxu0 0.0
    %276 = vmatpush1.msra.mxu0 0.0
    %277 = vmatprep.subr.mxu0 0.0
    %278 = vmatpush1.msra.mxu0 0.0
    %279 = vmatprep.subr.mxu0 0.0
    %280 = vmatpush1.msra.mxu0 0.0
    %281 = vmatprep.subr.mxu0 0.0
    %282 = vmatpush1.msra.mxu0 0.0
    %283 = vmatprep.subr.mxu0 0.0
    %284 = vmatpush1.msra.mxu0 0.0
    %285 = vmatprep.mubr.f32.mxu0 0.0
    %286 = vmatmul.mubr.f32.gmra.mrb[0].mxu0 %v216
    %v287 = vpop.f32.mrb[0].mxu0
    %v288 = vadd.f32 %v220, %v287
    %v289 = vpop.f32.mrb[0].mxu0
    %290 = vdwg.mxu0
    %v291 = vtanh.pop %v288
    %292 = vst [vmem:[%s2] sm:$0xff] %v291
    // Predicated region
    $region14: #{_lambda_.1} parent=1 // pred_check
      _
    $region15: #{_lambda_.1} parent=1 // pred_check_branch
      %294 = sbr.rel (0) target = $region17
    $region16: #{_lambda_.1} parent=1 // pred_region
      _
    $region17: #{_lambda_.1} parent=1 // pred_fallthru
      _
    // Predicated region
    $region18: #{_lambda_.1} parent=1 // pred_check
      _
    $region19: #{_lambda_.1} parent=1 // pred_check_branch
      %296 = sbr.rel (0) target = $region21
    $region20: #{_lambda_.1} parent=1 // pred_region
      _
    $region21: #{_lambda_.1} parent=1 // pred_fallthru
      _
    %297 = vsyncpa [#allocation3], 1

</llo_original>
